<compile_context>
chip_gen: v5e
topology: v5e:2x2
jax: 0.10.0
libtpu: 0.0.40
codegen_flags: <defaults>
</compile_context>

<pallas_src>
import math

import jax
import jax.numpy as jnp
from jax.experimental import pallas as pl
from jax.experimental.pallas import tpu as pltpu


def _round_up(n, m):
    return ((n + m - 1) // m) * m


def _tensorcores_per_chip():
    # v7x has 2 TensorCores per chip; v5e/v6e have 1. Best-effort query.
    try:
        kind = jax.devices()[0].device_kind.lower()
        return 2 if "v7" in kind else 1
    except Exception:
        return 1


def _default_vmem_limit_bytes():
    # ~75% of physical VMEM: ~48 MiB on v7x (64 MiB phys), ~96 MiB on v5e/v6e.
    cap = 64 * 1024 * 1024
    try:
        cap = int(pltpu.get_tpu_info().vmem_capacity_bytes)
    except Exception:
        pass
    return (cap * 3) // 4


def intent_classifier_kernel(x_ref, wT_ref, b_ref, o_ref):
    # Dropout is the identity at inference time.
    # TODO(synk): training-mode dropout (pltpu.prng_random_bits mask + 1/(1-p)
    # scaling) is not implemented; eval semantics only.
    x = x_ref[...]                    # (tm, H)   streaming row tile
    wT = wT_ref[...]                  # (H, L)    resident, pre-transposed
    b = b_ref[...]                    # (1, L)    resident, f32
    y = jnp.dot(x, wT, preferred_element_type=jnp.float32) + b
    o_ref[...] = y.astype(o_ref.dtype)


def intent_classifier(x, weight, bias, *, tm=2048, out_dtype=None,
                      vmem_limit_bytes=None):
    """IntentClassifier forward: dropout (identity in eval) -> linear.

    x: [..., H]; weight: [L, H] (PyTorch nn.Linear convention); bias: [L].
    Returns [..., L] in `out_dtype` (defaults to x.dtype).
    """
    *lead, H = x.shape
    L, Hw = weight.shape
    assert Hw == H, "weight last dim must match input feature dim"
    N = math.prod(lead) if lead else 1

    x2 = x.reshape(N, H)                               # metadata-only reshape
    out_dtype = x.dtype if out_dtype is None else out_dtype

    # Pre-transpose the tiny static weight once (wrapper-side) -> [H, L]; cast
    # it (not the big activation tensor) to the activation dtype for the MXU.
    wT = weight.T.astype(x2.dtype)                     # (H, L)
    b2 = bias.astype(jnp.float32).reshape(1, L)        # (1, L)

    x_itemsize = jnp.dtype(x2.dtype).itemsize
    o_itemsize = jnp.dtype(out_dtype).itemsize

    if vmem_limit_bytes is None:
        vmem_limit_bytes = _default_vmem_limit_bytes()

    # --- row-tile selection -------------------------------------------------
    # Sublane multiple depends on packing: 8 for f32, 16 for bf16, 32 for int8.
    sub = max(8, 32 // x_itemsize)
    tm = max(sub, _round_up(min(tm, N), sub))

    # Keep grid >= 2 only when the chip has 2 TensorCores (v7x) and there is
    # enough work; on v5e/v6e halving tm would just double sequential steps.
    if _tensorcores_per_chip() >= 2 and N >= 2 * sub:
        tm = min(tm, _round_up(pl.cdiv(N, 2), sub))

    def _vmem_bytes(tile_m):
        # Conservative: VMEM tiles are lane-padded to 128.
        x_row = _round_up(H, 128) * x_itemsize
        o_row = _round_up(L, 128) * o_itemsize
        w_buf = _round_up(H, 8) * _round_up(L, 128) * jnp.dtype(wT.dtype).itemsize
        b_buf = 8 * _round_up(L, 128) * 4
        return 2 * tile_m * (x_row + o_row) + 2 * (w_buf + b_buf)

    while tm > sub and _vmem_bytes(tm) > vmem_limit_bytes:
        tm = max(sub, _round_up(tm // 2, sub))

    # Ragged last block handled by Pallas: no row padding, no divisibility req.
    grid = (pl.cdiv(N, tm),)

    out2 = pl.pallas_call(
        intent_classifier_kernel,
        out_shape=jax.ShapeDtypeStruct((N, L), out_dtype),
        grid_spec=pltpu.PrefetchScalarGridSpec(
            num_scalar_prefetch=0,
            grid=grid,
            in_specs=[
                pl.BlockSpec((tm, H), lambda i: (i, 0)),   # streaming x rows
                pl.BlockSpec((H, L), lambda i: (0, 0)),    # resident weight^T
                pl.BlockSpec((1, L), lambda i: (0, 0)),    # resident bias
            ],
            out_specs=pl.BlockSpec((tm, L), lambda i: (i, 0)),
        ),
        compiler_params=pltpu.CompilerParams(
            dimension_semantics=("parallel",),
            vmem_limit_bytes=int(vmem_limit_bytes),
        ),
    )(x2, wT, b2)

    return out2.reshape(tuple(lead) + (L,))


if __name__ == "__main__":
    key = jax.random.PRNGKey(0)
    kx, kw, kb, kx2, kx3 = jax.random.split(key, 5)

    H, L = 32, 7  # hidden=32, 7 intent labels

    # nn.Linear-style params (reference PyTorch module); deterministic inputs.
    weight = jax.random.uniform(kw, (L, H), dtype=jnp.float32)
    bias = jax.random.uniform(kb, (L,), dtype=jnp.float32)

    # Case 1: pooled-output style input [batch, hidden] (typical for intents).
    x_pooled = jax.random.normal(kx, (6, H), dtype=jnp.float32)
    out1 = jax.block_until_ready(intent_classifier(x_pooled, weight, bias))
    ref1 = x_pooled @ weight.T + bias
    assert out1.shape == (6, L)
    assert jnp.allclose(out1, ref1, atol=1e-5, rtol=1e-5)

    # Case 2: sequence input [batch, seq, hidden].
    x_seq = jax.random.normal(kx2, (2, 8, H), dtype=jnp.float32)
    out2 = jax.block_until_ready(intent_classifier(x_seq, weight, bias))
    ref2 = x_seq @ weight.T + bias
    assert out2.shape == (2, 8, L)
    assert jnp.allclose(out2, ref2, atol=1e-5, rtol=1e-5)

    # Case 3: forces a multi-step grid with a ragged last block (N=60, tm=16
    # -> 4 steps, last block only 12 valid rows) to exercise boundary masking.
    x_rag = jax.random.normal(kx3, (3, 20, H), dtype=jnp.float32)
    out3 = jax.block_until_ready(intent_classifier(x_rag, weight, bias, tm=16))
    ref3 = x_rag @ weight.T + bias
    assert out3.shape == (3, 20, L)
    assert jnp.allclose(out3, ref3, atol=1e-5, rtol=1e-5)

    print("KERNEL_OK")
</pallas_src>

<mosaic_0001>
module attributes {stable_mosaic.version = 11 : i64} {
  func.func @intent_classifier_kernel(%arg0: i32, %arg1: memref<8x32xf32, #tpu.memory_space<vmem>>, %arg2: memref<32x7xf32, #tpu.memory_space<vmem>>, %arg3: memref<1x7xf32, #tpu.memory_space<vmem>>, %arg4: memref<8x7xf32, #tpu.memory_space<vmem>>) attributes {dimension_semantics = [#tpu.dimension_semantics<parallel>], iteration_bounds = array<i64: 1>, scalar_prefetch = 0 : i64, scratch_operands = 0 : i64, tpu.core_type = #tpu.core_type<tc>, window_params = [{transform_indices = @transform_0, window_bounds = array<i64: 8, 32>}, {pipeline_mode = #tpu.pipeline_mode<synchronous>, transform_indices = @transform_1, window_bounds = array<i64: 32, 7>}, {pipeline_mode = #tpu.pipeline_mode<synchronous>, transform_indices = @transform_2, window_bounds = array<i64: 1, 7>}, {transform_indices = @transform_3, window_bounds = array<i64: 8, 7>}]} {
    %c0 = arith.constant 0 : index
    %c0_0 = arith.constant 0 : index
    %0 = vector.load %arg1[%c0, %c0_0] : memref<8x32xf32, #tpu.memory_space<vmem>>, vector<8x32xf32>
    %c0_1 = arith.constant 0 : index
    %c0_2 = arith.constant 0 : index
    %1 = vector.load %arg2[%c0_1, %c0_2] : memref<32x7xf32, #tpu.memory_space<vmem>>, vector<32x7xf32>
    %c0_3 = arith.constant 0 : index
    %c0_4 = arith.constant 0 : index
    %2 = vector.load %arg3[%c0_3, %c0_4] : memref<1x7xf32, #tpu.memory_space<vmem>>, vector<1x7xf32>
    %cst = arith.constant dense<0.000000e+00> : vector<8x7xf32>
    %3 = tpu.matmul %0, %1, %cst {dimension_numbers = #tpu.dot_dimension_numbers<[1], [0], [0], [1], [0, 0, 1, 1], [], []>} : vector<8x32xf32>, vector<32x7xf32>, vector<8x7xf32> -> vector<8x7xf32>
    %4 = vector.broadcast %2 : vector<1x7xf32> to vector<8x7xf32>
    %5 = arith.addf %3, %4 : vector<8x7xf32>
    %c0_5 = arith.constant 0 : index
    %c0_6 = arith.constant 0 : index
    %6 = vector.load %arg4[%c0_5, %c0_6] : memref<8x7xf32, #tpu.memory_space<vmem>>, vector<8x7xf32>
    tpu.vector_store %arg4[%c0_5, %c0_6], %5 {strides = array<i32>} : memref<8x7xf32, #tpu.memory_space<vmem>>, vector<8x7xf32>,
    return
  }
  func.func @transform_0(%arg0: i32) -> (i32, i32) {
    %c0_i32 = arith.constant 0 : i32
    %c0_i32_0 = arith.constant 0 : i32
    return %arg0, %c0_i32 : i32, i32
  }
  func.func @transform_1(%arg0: i32) -> (i32, i32) {
    %c0_i32 = arith.constant 0 : i32
    %c0_i32_0 = arith.constant 0 : i32
    %c0_i32_1 = arith.constant 0 : i32
    return %c0_i32, %c0_i32_0 : i32, i32
  }
  func.func @transform_2(%arg0: i32) -> (i32, i32) {
    %c0_i32 = arith.constant 0 : i32
    %c0_i32_0 = arith.constant 0 : i32
    %c0_i32_1 = arith.constant 0 : i32
    return %c0_i32, %c0_i32_0 : i32, i32
  }
  func.func @transform_3(%arg0: i32) -> (i32, i32) {
    %c0_i32 = arith.constant 0 : i32
    %c0_i32_0 = arith.constant 0 : i32
    return %arg0, %c0_i32 : i32, i32
  }
}

</mosaic_0001>

<llo_original>
// kernel: tpu_custom_call.1
$region0: #{tpu_custom_call.1}
  #allocation0 [shape = 'u32[]', space=smem, size = 0x4, offset = 0x4, fixed_abs, tag = 'smem constant byte address 0x4 - core index']
  #allocation1 [shape = 'u32[72,128]{1,0:T(1,128)}', space=vmem, size = 0x9000, scoped, tag = 'internal scratch']
  %s0 = inlined_call_operand.vmem [shape: f32[6,32], index: 0, kind: input, shape index: {}]
  %s1 = inlined_call_operand.vmem [shape: f32[32,7], index: 1, kind: input, shape index: {}]
  %s2 = inlined_call_operand.vmem [shape: f32[1,7], index: 2, kind: input, shape index: {}]
  %s3 = inlined_call_operand.hbm [shape: f32[6,7], index: 3, kind: output, shape index: {}]
  %s4 = sld [smem:[#allocation0]]
  $region22: #{tpu_custom_call.1} parent=0
    _
  %s6 = ssub.s32 1, %s4
  %s7 = scalar_select 0, %s6, %s4
  $region1: #{tpu_custom_call.1} parent=0
    #allocation2 [shape = 'u8[4096]{0}', space=vmem, size = 0x1000, scoped, tag = 'output window, operand 0, single buffered']
    #allocation3 [shape = 's32[1]{0}', space=sflag, size = 0x4, scoped, tag = 'scoped memory for tpu_custom_call.1']
    %8 = vsyncpa [#allocation3], 0
    // Predicated region
    $region2: #{tpu_custom_call.1} parent=1 // pred_check
      _
    $region3: #{tpu_custom_call.1} parent=1 // pred_check_branch
      %10 = sbr.rel (0) target = $region5
    $region4: #{tpu_custom_call.1} parent=1 // pred_region
      _
    $region5: #{tpu_custom_call.1} parent=1 // pred_fallthru
      _
    // Predicated region
    $region6: #{tpu_custom_call.1} parent=1 // pred_check
      _
    $region7: #{tpu_custom_call.1} parent=1 // pred_check_branch
      %12 = sbr.rel (0) target = $region9
    $region8: #{tpu_custom_call.1} parent=1 // pred_region
      _
    $region9: #{tpu_custom_call.1} parent=1 // pred_fallthru
      _
    // Predicated region
    $region10: #{tpu_custom_call.1} parent=1 // pred_check
      _
    $region11: #{tpu_custom_call.1} parent=1 // pred_check_branch
      %14 = sbr.rel (0) target = $region13
    $region12: #{tpu_custom_call.1} parent=1 // pred_region
      _
    $region13: #{tpu_custom_call.1} parent=1 // pred_fallthru
      _
    %v15 = vld [vmem:[%s0] sm:$0xff]
    %v16 = vld [vmem:[%s1] sm:$0xff]
    %v17 = vld [vmem:[%s1 + $0x8] sm:$0xff]
    %v18 = vld [vmem:[%s1 + $0x10] sm:$0xff]
    %v19 = vld [vmem:[%s1 + $0x18] sm:$0xff]
    %v20 = vld [vmem:[%s2] sm:$0x1]
    %v22 = vperm.slane %v20, 0
    %vm24 = vcmask 261120
    %v26 = vsel %vm24, %v15, 0
    %28 = vmatpush.msra.mxu0 0.0
    %29 = vmatpush.msra.mxu0 0.0
    %30 = vmatpush.msra.mxu0 0.0
    %31 = vmatpush.msra.mxu0 0.0
    %32 = vmatpush.msra.mxu0 0.0
    %33 = vmatpush.msra.mxu0 0.0
    %34 = vmatpush.msra.mxu0 0.0
    %35 = vmatpush.msra.mxu0 0.0
    %36 = vmatpush.msra.mxu0 0.0
    %37 = vmatpush.msra.mxu0 0.0
    %38 = vmatpush.msra.mxu0 0.0
    %39 = vmatpush.msra.mxu0 0.0
    %40 = vmatpush.msra.mxu0 %v19
    %41 = vmatpush.msra.mxu0 %v18
    %42 = vmatpush.msra.mxu0 %v17
    %43 = vmatpush.msra.mxu0 %v16
    %44 = vmatmul.f32.gmra.mxu0 %v26
    %v45 = vpop.f32.mrf.mxu0
    %v46 = vadd.f32 %v22, %v45
    %47 = vdwg.mxu0
    %vm48 = vcmask 56320
    %49 = vst.msk [vmem:[#allocation2] sm:$0xff] %vm48, %v46
    // Predicated region
    $region14: #{tpu_custom_call.1} parent=1 // pred_check
      _
    $region15: #{tpu_custom_call.1} parent=1 // pred_check_branch
      %51 = sbr.rel (0) target = $region17
    $region16: #{tpu_custom_call.1} parent=1 // pred_region
      %53 = vsyncadd [#allocation3], 0
      %s55 = sshll.u32 [#allocation2], 4
      %s56 = int_to_ptr.vmem [resolvable:$true] %s55
      %s57 = sshll.u32 %s3, 4
      %s58 = int_to_ptr.hbm [resolvable:$true] %s57
      %60 = dma.vmem_to_hbm [thread:$0]  %s56, 128, %s58, [#allocation3]
    $region17: #{tpu_custom_call.1} parent=1 // pred_fallthru
      _
    // Predicated region
    $region18: #{tpu_custom_call.1} parent=1 // pred_check
      _
    $region19: #{tpu_custom_call.1} parent=1 // pred_check_branch
      %62 = sbr.rel (0) target = $region21
    $region20: #{tpu_custom_call.1} parent=1 // pred_region
      %64 = dma.done [#allocation3], 128
    $region21: #{tpu_custom_call.1} parent=1 // pred_fallthru
      _
    %65 = vsyncpa [#allocation3], 1

</llo_original>
